<compile_context>
chip_gen: v7x
topology: tpu7x:2x2x1
jax: 0.10.0
libtpu: 0.0.40
codegen_flags: <defaults>
</compile_context>

<pallas_src>
import functools

import jax
import jax.numpy as jnp
from jax.experimental import pallas as pl
from jax.experimental.pallas import tpu as pltpu

CONTRASTIVE_MARGIN = 1.0
CONTRASTIVE_WEIGHT = 1.0
_EPS = 1e-8  # torch F.cosine_similarity eps (clamped on the product of norms)


def _round_up(x, m):
    return ((x + m - 1) // m) * m


def _choose_block_rows(B, D, itemsize):
    """Largest batch tile that keeps 2 inputs x 2 pipeline buffers under ~16 MiB."""
    budget = 16 * 1024 * 1024
    per_row_bytes = max(1, 4 * D * itemsize)       # 2 inputs x 2 buffers per row
    max_tb = max(8, budget // per_row_bytes)
    tb = min(512, max_tb, _round_up(B, 8))
    return max(8, (tb // 8) * 8)


def _contrastive_tile_kernel(true_b, f1_ref, f2_ref, lab_ref, out_ref):
    tb = f1_ref.shape[0]

    f1 = f1_ref[...].astype(jnp.float32)           # (TB, D)
    f2 = f2_ref[...].astype(jnp.float32)           # (TB, D)
    lab = lab_ref[...].astype(jnp.float32)         # (TB, 1)

    # Row-wise reductions along the feature (lane) axis.
    dot = jnp.sum(f1 * f2, axis=-1, keepdims=True)      # (TB, 1)
    n1sq = jnp.sum(f1 * f1, axis=-1, keepdims=True)
    n2sq = jnp.sum(f2 * f2, axis=-1, keepdims=True)

    # PyTorch clamps the *product* of norms at eps: dot / max(||a||*||b||, eps).
    den2 = jnp.maximum(n1sq * n2sq, _EPS * _EPS)
    sim = dot * jax.lax.rsqrt(den2)
    dist = 1.0 - sim

    pos = lab * dist * dist
    neg_t = jnp.maximum(CONTRASTIVE_MARGIN - dist, 0.0)
    neg = (1.0 - lab) * neg_t * neg_t
    per_row = pos + neg                                  # (TB, 1)

    # Mask padded tail rows in the last tile.
    row_ids = jax.lax.broadcasted_iota(jnp.int32, per_row.shape, 0)
    remaining = true_b - pl.program_id(0) * tb
    per_row = jnp.where(row_ids < remaining, per_row, 0.0)

    tile_sum = jnp.sum(per_row)
    # Lane-dense (1, 128) partial-sum output (unmasked vector store).
    out_ref[...] = jnp.broadcast_to(tile_sum, out_ref.shape).astype(jnp.float32)


def contrastive_loss_pallas(features1, features2, labels, *, block_rows=None):
    """features1, features2: (B, D); labels: (B,) binary.  Returns scalar f32 loss."""
    B, D = features1.shape
    itemsize = jnp.dtype(features1.dtype).itemsize

    if block_rows is None:
        block_rows = _choose_block_rows(B, D, itemsize)
    tb = max(8, (int(block_rows) // 8) * 8)

    b_pad = _round_up(B, tb)
    num_tiles = b_pad // tb

    f1 = features1
    f2 = features2
    lab = labels.reshape(B, 1).astype(jnp.float32)
    if b_pad != B:
        pad = ((0, b_pad - B), (0, 0))
        f1 = jnp.pad(f1, pad)
        f2 = jnp.pad(f2, pad)
        lab = jnp.pad(lab, pad)

    # TODO(synk): if D itself is too large for a (TB, D) tile, additionally tile D
    # ("arbitrary" inner axis) and carry per-row partial dot/n1sq/n2sq in VMEM scratch.

    kernel = functools.partial(_contrastive_tile_kernel, B)

    cost = pl.CostEstimate(
        flops=int(8 * B * D),
        transcendentals=int(B),
        bytes_accessed=int(2 * B * D * itemsize + B * 4 + num_tiles * 128 * 4),
    )

    partials = pl.pallas_call(
        kernel,
        out_shape=jax.ShapeDtypeStruct((num_tiles, 128), jnp.float32),
        grid=(num_tiles,),
        in_specs=[
            pl.BlockSpec((tb, D), lambda i: (i, 0)),
            pl.BlockSpec((tb, D), lambda i: (i, 0)),
            pl.BlockSpec((tb, 1), lambda i: (i, 0)),
        ],
        out_specs=pl.BlockSpec((1, 128), lambda i: (i, 0)),
        compiler_params=pltpu.CompilerParams(
            dimension_semantics=("parallel",),
        ),
        cost_estimate=cost,
    )(f1, f2, lab)

    # Sum of per-tile contributions divided by the true batch size (not mean-of-means).
    return jnp.sum(partials[:, 0]) / B


def _contrastive_reference(features1, features2, labels):
    f1 = features1.astype(jnp.float32)
    f2 = features2.astype(jnp.float32)
    lab = labels.astype(jnp.float32)
    dot = jnp.sum(f1 * f2, axis=1)
    n1sq = jnp.sum(f1 * f1, axis=1)
    n2sq = jnp.sum(f2 * f2, axis=1)
    sim = dot / jnp.sqrt(jnp.maximum(n1sq * n2sq, _EPS * _EPS))
    dist = 1.0 - sim
    pos = lab * dist ** 2
    neg = (1.0 - lab) * jnp.maximum(CONTRASTIVE_MARGIN - dist, 0.0) ** 2
    return jnp.mean(pos + neg)


def verification_loss(features1, features2, labels, logits=None, *,
                      use_pallas=None, block_rows=None):
    """Mirrors VerificationLoss.forward with default flags (contrastive only)."""
    B, D = features1.shape
    if use_pallas is None:
        # Tiny problems don't amortize a kernel launch; use the fused-jnp path.
        use_pallas = B * D >= 32768
    if use_pallas:
        contrastive = contrastive_loss_pallas(
            features1, features2, labels, block_rows=block_rows)
    else:
        contrastive = _contrastive_reference(features1, features2, labels)
    losses = {"contrastive": contrastive}
    total_loss = CONTRASTIVE_WEIGHT * contrastive
    # TODO(synk): use_triplet / use_focal branches are disabled in the default config
    # (use_triplet=False, use_focal=False) and are intentionally not implemented here.
    return total_loss, losses


if __name__ == "__main__":
    key = jax.random.PRNGKey(0)
    k1, k2, k3, k4, k5, k6 = jax.random.split(key, 6)

    # Case 1: original tiny test shape, forced through the Pallas path (single tile).
    B1, D1 = 8, 32
    f1a = jax.random.normal(k1, (B1, D1), dtype=jnp.float32)
    f2a = jax.random.normal(k2, (B1, D1), dtype=jnp.float32)
    laba = jax.random.bernoulli(k3, 0.5, (B1,)).astype(jnp.float32)

    total1, losses1 = verification_loss(f1a, f2a, laba, use_pallas=True)
    total1 = jax.block_until_ready(total1)
    ref1 = _contrastive_reference(f1a, f2a, laba)
    assert jnp.allclose(total1, ref1, atol=1e-5, rtol=1e-5), (total1, ref1)

    # Case 2: bf16 features, non-divisible batch -> multi-tile grid + tail-row masking.
    B2, D2 = 50, 128
    f1b = jax.random.normal(k4, (B2, D2), dtype=jnp.bfloat16)
    f2b = jax.random.normal(k5, (B2, D2), dtype=jnp.bfloat16)
    labb = jax.random.bernoulli(k6, 0.5, (B2,)).astype(jnp.float32)

    total2, losses2 = verification_loss(f1b, f2b, labb, use_pallas=True, block_rows=32)
    total2 = jax.block_until_ready(total2)
    ref2 = _contrastive_reference(f1b, f2b, labb)
    assert jnp.allclose(total2, ref2, atol=5e-3, rtol=5e-3), (total2, ref2)

    print("KERNEL_OK")
</pallas_src>

<mosaic_0001>
module attributes {stable_mosaic.version = 11 : i64} {
  func.func @_contrastive_tile_kernel(%arg0: i32, %arg1: memref<8x32xf32, #tpu.memory_space<vmem>>, %arg2: memref<8x32xf32, #tpu.memory_space<vmem>>, %arg3: memref<8x1xf32, #tpu.memory_space<vmem>>, %arg4: memref<1x128xf32, #tpu.memory_space<vmem>>) attributes {dimension_semantics = [#tpu.dimension_semantics<parallel>], iteration_bounds = array<i64: 1>, scalar_prefetch = 0 : i64, scratch_operands = 0 : i64, tpu.core_type = #tpu.core_type<tc>, window_params = [{transform_indices = @transform_0, window_bounds = array<i64: 8, 32>}, {transform_indices = @transform_1, window_bounds = array<i64: 8, 32>}, {transform_indices = @transform_2, window_bounds = array<i64: 8, 1>}, {transform_indices = @transform_3, window_bounds = array<i64: 1, 128>}]} {
    %c0 = arith.constant 0 : index
    %c0_0 = arith.constant 0 : index
    %0 = vector.load %arg1[%c0, %c0_0] : memref<8x32xf32, #tpu.memory_space<vmem>>, vector<8x32xf32>
    %c0_1 = arith.constant 0 : index
    %c0_2 = arith.constant 0 : index
    %1 = vector.load %arg2[%c0_1, %c0_2] : memref<8x32xf32, #tpu.memory_space<vmem>>, vector<8x32xf32>
    %c0_3 = arith.constant 0 : index
    %c0_4 = arith.constant 0 : index
    %2 = vector.load %arg3[%c0_3, %c0_4] : memref<8x1xf32, #tpu.memory_space<vmem>>, vector<8x1xf32>
    %3 = arith.mulf %0, %1 : vector<8x32xf32>
    %cst = arith.constant dense<0.000000e+00> : vector<8xf32>
    %4 = vector.multi_reduction <add>, %3, %cst [1] : vector<8x32xf32> to vector<8xf32>
    %5 = vector.shape_cast %4 : vector<8xf32> to vector<8x1xf32>
    %6 = arith.mulf %0, %0 : vector<8x32xf32>
    %cst_5 = arith.constant dense<0.000000e+00> : vector<8xf32>
    %7 = vector.multi_reduction <add>, %6, %cst_5 [1] : vector<8x32xf32> to vector<8xf32>
    %8 = vector.shape_cast %7 : vector<8xf32> to vector<8x1xf32>
    %9 = arith.mulf %1, %1 : vector<8x32xf32>
    %cst_6 = arith.constant dense<0.000000e+00> : vector<8xf32>
    %10 = vector.multi_reduction <add>, %9, %cst_6 [1] : vector<8x32xf32> to vector<8xf32>
    %11 = vector.shape_cast %10 : vector<8xf32> to vector<8x1xf32>
    %12 = arith.mulf %8, %11 : vector<8x1xf32>
    %cst_7 = arith.constant 1.000000e-16 : f32
    %13 = vector.broadcast %cst_7 : f32 to vector<8x1xf32>
    %14 = arith.maximumf %12, %13 : vector<8x1xf32>
    %15 = math.rsqrt %14 : vector<8x1xf32>
    %16 = arith.mulf %5, %15 : vector<8x1xf32>
    %cst_8 = arith.constant 1.000000e+00 : f32
    %17 = vector.broadcast %cst_8 : f32 to vector<8x1xf32>
    %18 = arith.subf %17, %16 : vector<8x1xf32>
    %19 = arith.mulf %2, %18 : vector<8x1xf32>
    %20 = arith.mulf %19, %18 : vector<8x1xf32>
    %cst_9 = arith.constant 1.000000e+00 : f32
    %21 = vector.broadcast %cst_9 : f32 to vector<8x1xf32>
    %22 = arith.subf %21, %18 : vector<8x1xf32>
    %cst_10 = arith.constant 0.000000e+00 : f32
    %23 = vector.broadcast %cst_10 : f32 to vector<8x1xf32>
    %24 = arith.maximumf %22, %23 : vector<8x1xf32>
    %cst_11 = arith.constant 1.000000e+00 : f32
    %25 = vector.broadcast %cst_11 : f32 to vector<8x1xf32>
    %26 = arith.subf %25, %2 : vector<8x1xf32>
    %27 = arith.mulf %26, %24 : vector<8x1xf32>
    %28 = arith.mulf %27, %24 : vector<8x1xf32>
    %29 = arith.addf %20, %28 : vector<8x1xf32>
    %30 = tpu.iota {dimensions = array<i32: 0>} : vector<8x1xi32>
    %c8_i32 = arith.constant 8 : i32
    %31 = arith.muli %arg0, %c8_i32 : i32
    %c8_i32_12 = arith.constant 8 : i32
    %32 = arith.subi %c8_i32_12, %31 : i32
    %33 = vector.broadcast %32 : i32 to vector<8x1xi32>
    %34 = arith.cmpi slt, %30, %33 : vector<8x1xi32>
    %cst_13 = arith.constant 0.000000e+00 : f32
    %35 = vector.broadcast %cst_13 : f32 to vector<8x1xf32>
    %36 = arith.select %34, %29, %35 : vector<8x1xi1>, vector<8x1xf32>
    %37 = vector.shape_cast %36 : vector<8x1xf32> to vector<1x8x1xf32>
    %cst_14 = arith.constant dense<0.000000e+00> : vector<1xf32>
    %38 = vector.multi_reduction <add>, %37, %cst_14 [1, 2] : vector<1x8x1xf32> to vector<1xf32>
    %39 = vector.shape_cast %38 : vector<1xf32> to vector<1x1x1xf32>
    %40 = vector.extract %39[0, 0, 0] : f32 from vector<1x1x1xf32>
    %41 = vector.broadcast %40 : f32 to vector<1x128xf32>
    %c0_15 = arith.constant 0 : index
    %c0_16 = arith.constant 0 : index
    %42 = vector.load %arg4[%c0_15, %c0_16] : memref<1x128xf32, #tpu.memory_space<vmem>>, vector<1x128xf32>
    tpu.vector_store %arg4[%c0_15, %c0_16], %41 {strides = array<i32>} : memref<1x128xf32, #tpu.memory_space<vmem>>, vector<1x128xf32>,
    return
  }
  func.func @transform_0(%arg0: i32) -> (i32, i32) {
    %c0_i32 = arith.constant 0 : i32
    %c0_i32_0 = arith.constant 0 : i32
    return %arg0, %c0_i32 : i32, i32
  }
  func.func @transform_1(%arg0: i32) -> (i32, i32) {
    %c0_i32 = arith.constant 0 : i32
    %c0_i32_0 = arith.constant 0 : i32
    return %arg0, %c0_i32 : i32, i32
  }
  func.func @transform_2(%arg0: i32) -> (i32, i32) {
    %c0_i32 = arith.constant 0 : i32
    %c0_i32_0 = arith.constant 0 : i32
    return %arg0, %c0_i32 : i32, i32
  }
  func.func @transform_3(%arg0: i32) -> (i32, i32) {
    %c0_i32 = arith.constant 0 : i32
    %c0_i32_0 = arith.constant 0 : i32
    return %arg0, %c0_i32 : i32, i32
  }
}

</mosaic_0001>

<llo_original>
// kernel: tpu_custom_call.1
$region0: #{tpu_custom_call.1}
  #allocation0 [shape = 'u32[]', space=smem, size = 0x4, offset = 0x4, fixed_abs, tag = 'smem constant byte address 0x4 - core index']
  #allocation1 [shape = 'u32[144,128]{1,0:T(1,128)}', space=vmem, size = 0x12000, scoped, tag = 'internal scratch']
  %s0 = inlined_call_operand.vmem [shape: f32[8,32], index: 0, kind: input, shape index: {}]
  %s1 = inlined_call_operand.hbm [shape: f32[8,32], index: 1, kind: input, shape index: {}]
  %s2 = inlined_call_operand.vmem [shape: f32[8,1], index: 2, kind: input, shape index: {}]
  %s3 = inlined_call_operand.hbm [shape: f32[1,128], index: 3, kind: output, shape index: {}]
  %s4 = sld [smem:[#allocation0]]
  $region26: #{tpu_custom_call.1} parent=0
    _
  %s6 = ssub.s32 1, %s4
  %s7 = scalar_select 0, %s6, %s4
  $region1: #{tpu_custom_call.1} parent=0
    #allocation2 [shape = 'u8[4096]{0}', space=vmem, size = 0x1000, scoped, tag = 'input window, operand 1, single buffered']
    #allocation3 [shape = 's32[1]{0}', space=sflag, size = 0x4, scoped, tag = 'scoped memory for tpu_custom_call.1']
    #allocation4 [shape = 's32[1]{0}', space=sflag, size = 0x4, scoped, tag = 'scoped memory for tpu_custom_call.1']
    #allocation5 [shape = 'u8[512]{0}', space=vmem, size = 0x400, scoped, tag = 'output window, operand 0, single buffered']
    %8 = vsyncpa [#allocation3], 0
    %9 = vsyncpa [#allocation4], 0
    // Predicated region
    $region2: #{tpu_custom_call.1} parent=1 // pred_check
      _
    $region3: #{tpu_custom_call.1} parent=1 // pred_check_branch
      %11 = sbr.rel (0) target = $region5
    $region4: #{tpu_custom_call.1} parent=1 // pred_region
      _
    $region5: #{tpu_custom_call.1} parent=1 // pred_fallthru
      _
    // Predicated region
    $region6: #{tpu_custom_call.1} parent=1 // pred_check
      _
    $region7: #{tpu_custom_call.1} parent=1 // pred_check_branch
      %13 = sbr.rel (0) target = $region9
    $region8: #{tpu_custom_call.1} parent=1 // pred_region
      %s15 = ssub.s32 128, 128
      %16 = vsyncadd [#allocation3], %s15
      %s18 = sshll.u32 [#allocation2], 4
      %s19 = int_to_ptr.vmem [resolvable:$true] %s18
      %21 = dma.hbm_to_vmem [thread:$0]  %s1, 128, %s19, [#allocation3]
    $region9: #{tpu_custom_call.1} parent=1 // pred_fallthru
      _
    // Predicated region
    $region10: #{tpu_custom_call.1} parent=1 // pred_check
      _
    $region11: #{tpu_custom_call.1} parent=1 // pred_check_branch
      %23 = sbr.rel (0) target = $region13
    $region12: #{tpu_custom_call.1} parent=1 // pred_region
      _
    $region13: #{tpu_custom_call.1} parent=1 // pred_fallthru
      _
    // Predicated region
    $region14: #{tpu_custom_call.1} parent=1 // pred_check
      _
    $region15: #{tpu_custom_call.1} parent=1 // pred_check_branch
      %25 = sbr.rel (0) target = $region17
    $region16: #{tpu_custom_call.1} parent=1 // pred_region
      %26 = dma.done [#allocation3], 128
    $region17: #{tpu_custom_call.1} parent=1 // pred_fallthru
      _
    %v27 = vld [vmem:[%s0] sm:$0xff]
    %v28 = vld [vmem:[#allocation2] sm:$0xff]
    %v29 = vld [vmem:[%s2] sm:$0xff]
    %v30 = vmul.f32 %v27, %v28
    %vm31 = vcmask 261120
    %v32 = vsel %vm31, %v30, 0.0
    %33 = vadd.xlane.f32.xlu0 %v32
    %v34 = vpop.xlane.xlu0 %33
    %v35 = vmul.f32 %v27, %v27
    %v36 = vsel %vm31, %v35, 0.0
    %37 = vadd.xlane.f32.xlu0 %v36
    %v38 = vpop.xlane.xlu0 %37
    %v39 = vmul.f32 %v28, %v28
    %v40 = vsel %vm31, %v39, 0.0
    %41 = vadd.xlane.f32.xlu0 %v40
    %v42 = vpop.xlane.xlu0 %41
    %v43 = vmul.f32 %v38, %v42
    %v44 = vmax.f32 %v43, 1e-16
    %v45 = vrsqrt.pop %v44
    %v46 = vmul.f32 %v34, %v45
    %v47 = vsub.f32 1.0, %v46
    %v48 = vmul.f32 %v29, %v47
    %v49 = vmul.f32 %v48, %v47
    %v50 = vsub.f32 1.0, %v47
    %v51 = vmax.f32 %v50, 0.0
    %v52 = vsub.f32 1.0, %v29
    %v53 = vmul.f32 %v52, %v51
    %v54 = vmul.f32 %v53, %v51
    %v55 = vadd.f32 %v49, %v54
    %v56 = vlaneseq
    %v57 = vshrl.u32 %v56, 7
    %s58 = smul.u32 0, 8
    %s59 = ssub.s32 8, %s58
    %v60 = vstv %s59
    %vm61 = vcmp.lt.s32.totalorder %v57, %v60
    %v62 = vsel %vm61, %v55, 0.0
    %vm63 = vcmask 7168
    %v64 = vsel %vm63, %v62, 0.0
    %65 = vadd.xlane.f32.xlu0 %v64
    %v66 = vpop.xlane.xlu0 %65
    %v67 = vrot.slane %v66, 4
    %v68 = vadd.f32 %v66, %v67
    %v69 = vrot.slane %v68, 2
    %v70 = vadd.f32 %v68, %v69
    %v71 = vrot.slane %v70, 1
    %v72 = vadd.f32 %v70, %v71
    %s73 = vtos %v72
    %v74 = vstv %s73
    %75 = vst [vmem:[#allocation5] sm:$0x1] %v74
    // Predicated region
    $region18: #{tpu_custom_call.1} parent=1 // pred_check
      _
    $region19: #{tpu_custom_call.1} parent=1 // pred_check_branch
      %77 = sbr.rel (0) target = $region21
    $region20: #{tpu_custom_call.1} parent=1 // pred_region
      %s79 = ssub.s32 16, 16
      %80 = vsyncadd [#allocation4], %s79
      %s82 = sshll.u32 [#allocation5], 4
      %s83 = int_to_ptr.vmem [resolvable:$true] %s82
      %85 = dma.vmem_to_hbm [thread:$0]  %s83, 16, %s3, [#allocation4]
    $region21: #{tpu_custom_call.1} parent=1 // pred_fallthru
      _
    // Predicated region
    $region22: #{tpu_custom_call.1} parent=1 // pred_check
      _
    $region23: #{tpu_custom_call.1} parent=1 // pred_check_branch
      %87 = sbr.rel (0) target = $region25
    $region24: #{tpu_custom_call.1} parent=1 // pred_region
      %88 = dma.done [#allocation4], 16
    $region25: #{tpu_custom_call.1} parent=1 // pred_fallthru
      _
    %89 = vsyncpa [#allocation3], 1
    %90 = vsyncpa [#allocation4], 1

</llo_original>
